<compile_context>
chip_gen: v5e
topology: v5e:2x2
jax: 0.10.0
libtpu: 0.0.40
codegen_flags: <defaults>
</compile_context>

<pallas_src>
import jax
import jax.numpy as jnp
from jax.experimental import pallas as pl
from jax.experimental.pallas import tpu as pltpu


# ----------------------------------------------------------------------------
# Tuning constants
# ----------------------------------------------------------------------------
_TARGET_STEP_BYTES = 8 * 1024 * 1024     # x + z + out blocks per grid step (pre double-buffer)
_VMEM_LIMIT_BYTES = 32 * 1024 * 1024     # explicit scoped-VMEM limit (safe v5e/v6e/v7x)
_MAX_LANE_BLOCK = 4096                   # column-tile width (multiple of 128)
_MIN_SPLIT_BYTES = 512 * 1024            # only force >=2 grid steps if a block is this big
_MAX_UNROLL_CHANNELS = 64                # cap on the static channel loop (lane-dense path)


def _round_up(a, b):
    return ((a + b - 1) // b) * b


def _sublane_mult(*dtypes):
    """Dtype-aware sublane packing multiple (8 f32, 16 bf16, 32 int8/fp8)."""
    m = 8
    for dt in dtypes:
        m = max(m, 32 // max(1, jnp.dtype(dt).itemsize))
    return m


def _pick_block_rows(total_rows, padded_row_bytes, sublane_mult):
    rows = max(1, _TARGET_STEP_BYTES // max(1, padded_row_bytes))
    if rows >= total_rows:
        return total_rows                        # full extent: always legal
    rows = max(sublane_mult, (rows // sublane_mult) * sublane_mult)
    return min(rows, total_rows)


def _maybe_split_rows(br, total_rows, row_bytes, sublane_mult, n_steps):
    """Ensure >=2 grid steps (v7x has 2 TCs) when the work is big enough."""
    if n_steps > 1 or total_rows <= sublane_mult:
        return br
    if br * row_bytes < _MIN_SPLIT_BYTES:
        return br                                # trivially small; not worth the step overhead
    cand = max(sublane_mult, _round_up(pl.cdiv(total_rows, 2), sublane_mult))
    return cand if cand < total_rows else br


def _vmem_limit(step_bytes):
    need = 2 * step_bytes + (4 << 20)            # double-buffered blocks + slack
    return int(min(max(_VMEM_LIMIT_BYTES, need), 120 * 1024 * 1024))


# ----------------------------------------------------------------------------
# Kernel 1: generic tiled multiply.
#   x block: (br, bc)
#   z block: (br, 1)   -> row-broadcast (4-D aligned path)
#         or (br, bc)  -> plain elementwise (2-D path)
# Cast / promotion happens in-kernel (no wrapper-side astype pass over z).
# ----------------------------------------------------------------------------
def _mul_kernel(x_ref, z_ref, o_ref):
    o_ref[...] = (x_ref[...] * z_ref[...]).astype(o_ref.dtype)


def _tiled_mul(x2d, z2d, out_dtype):
    """out[r, c] = x2d[r, c] * z2d[r, c or 0]; z2d last dim may be 1 (row broadcast)."""
    R, L = x2d.shape
    zc = z2d.shape[1]
    smult = _sublane_mult(x2d.dtype, z2d.dtype, out_dtype)

    # Column (lane) tiling only when the width is 128-aligned and large.
    if L % 128 == 0 and L > _MAX_LANE_BLOCK:
        bc = _MAX_LANE_BLOCK
    else:
        bc = L
    bz = 1 if zc == 1 else bc

    # Lane-padding-aware per-row byte estimate (x block + out block + z block).
    pad_c = _round_up(bc, 128)
    pad_z = _round_up(bz, 128)
    row_bytes = (pad_c * (x2d.dtype.itemsize + jnp.dtype(out_dtype).itemsize)
                 + pad_z * z2d.dtype.itemsize)

    br = _pick_block_rows(R, row_bytes, smult)
    n_steps = pl.cdiv(R, br) * pl.cdiv(L, bc)
    br = _maybe_split_rows(br, R, row_bytes, smult, n_steps)

    grid = (pl.cdiv(R, br), pl.cdiv(L, bc))
    z_index_map = (lambda i, j: (i, 0)) if zc == 1 else (lambda i, j: (i, j))

    return pl.pallas_call(
        _mul_kernel,
        out_shape=jax.ShapeDtypeStruct((R, L), out_dtype),
        grid=grid,
        in_specs=[
            pl.BlockSpec((br, bc), lambda i, j: (i, j)),   # x: streamed tiles
            pl.BlockSpec((br, bz), z_index_map),           # z: streamed per tile
        ],
        out_specs=pl.BlockSpec((br, bc), lambda i, j: (i, j)),
        compiler_params=pltpu.CompilerParams(
            dimension_semantics=("parallel", "parallel"),
            vmem_limit_bytes=_vmem_limit(br * row_bytes)),
    )(x2d, z2d)


# ----------------------------------------------------------------------------
# Kernel 2: lane-dense path for small / non-128-aligned H*W.
#   x block: (br, C*HW) lane-dense; z block: (br, C) tiny.
#   Gate values are expanded in-kernel with a static per-channel slice loop
#   (static ref slices -> guaranteed lowering, no reshapes).
# ----------------------------------------------------------------------------
def _lane_dense_mul(x2d, zrows, C, HW, out_dtype):
    N, L = x2d.shape                      # L == C * HW
    smult = _sublane_mult(x2d.dtype, zrows.dtype, out_dtype)

    pad_c = _round_up(L, 128)
    pad_z = _round_up(C, 128)
    row_bytes = (pad_c * (x2d.dtype.itemsize + jnp.dtype(out_dtype).itemsize)
                 + pad_z * zrows.dtype.itemsize)

    br = _pick_block_rows(N, row_bytes, smult)
    br = _maybe_split_rows(br, N, row_bytes, smult, pl.cdiv(N, br))

    def kernel(x_ref, z_ref, o_ref):
        zb = z_ref[...]
        for c in range(C):                                 # static unroll (C <= 64)
            sl = slice(c * HW, (c + 1) * HW)
            o_ref[:, sl] = (x_ref[:, sl] * zb[:, c:c + 1]).astype(o_ref.dtype)

    return pl.pallas_call(
        kernel,
        out_shape=jax.ShapeDtypeStruct((N, L), out_dtype),
        grid=(pl.cdiv(N, br),),
        in_specs=[
            pl.BlockSpec((br, L), lambda i: (i, 0)),       # lane-dense x rows
            pl.BlockSpec((br, C), lambda i: (i, 0)),       # tiny z rows
        ],
        out_specs=pl.BlockSpec((br, L), lambda i: (i, 0)),
        compiler_params=pltpu.CompilerParams(
            dimension_semantics=("parallel",),
            vmem_limit_bytes=_vmem_limit(br * row_bytes)),
    )(x2d, zrows)


# ----------------------------------------------------------------------------
# Wrapper (glue: reshapes + path selection + pallas_call plumbing)
# ----------------------------------------------------------------------------
def gate_forward(x, z, num_gates=None):
    """Gate.forward: x * z with the reshape/broadcast rules of the module.

    x: (N, C, H, W)  or  (N, num_gates)
    z: array with N * num_gates elements (output of get_weight(x))
    Output dtype follows PyTorch promotion: result_type(x, z).
    """
    out_dtype = jnp.result_type(x.dtype, z.dtype)

    if x.ndim == 4:
        N, C, H, W = x.shape
        HW = H * W
        itembytes = x.dtype.itemsize + jnp.dtype(out_dtype).itemsize

        if HW % 128 != 0 and C <= _MAX_UNROLL_CHANNELS and \
                8 * _round_up(C * HW, 128) * itembytes <= _TARGET_STEP_BYTES:
            # Small / unaligned spatial: lane-dense rows (N, C*HW), in-kernel z expand.
            x_flat = x.reshape(N, C * HW)
            z_rows = z.reshape(N, C)
            out = _lane_dense_mul(x_flat, z_rows, C, HW, out_dtype)
        else:
            # 128-aligned (or very large C): (N*C, HW) rows with (N*C, 1) gate column.
            x_flat = x.reshape(N * C, HW)
            z_col = z.reshape(N * C, 1)
            out = _tiled_mul(x_flat, z_col, out_dtype)
        return out.reshape(N, C, H, W)
    else:
        # 2-D (linear) path: z is the same shape as x.
        return _tiled_mul(x, z.reshape(x.shape), out_dtype)


# ----------------------------------------------------------------------------
# Demo / correctness check
# ----------------------------------------------------------------------------
if __name__ == "__main__":
    key = jax.random.PRNGKey(0)
    kx, kz, kx2, kx3, kz3, kxb = jax.random.split(key, 6)

    N, C, H, W = 2, 4, 16, 16          # num_gates = C = 4

    x = jax.random.normal(kx, (N, C, H, W), dtype=jnp.float32)

    # TODO(synk): get_weight / get_mask / get_reg are abstract (NotImplementedError)
    # in the base Gate class; the gate weights z = get_weight(x) are produced
    # deterministically in-script as a per-sample (N, num_gates) vector.
    z = jax.nn.sigmoid(jax.random.normal(kz, (N, C), dtype=jnp.float32))

    # 4-D (conv, NCHW) path, 128-aligned spatial (16x16)
    out4 = gate_forward(x, z)
    jax.block_until_ready(out4)
    ref4 = x * z[:, :, None, None]
    assert out4.shape == (N, C, H, W)
    assert jnp.allclose(out4, ref4, atol=1e-6), "4D gate mismatch"

    # 4-D path with non-128-multiple spatial size (7x7 feature map) -> lane-dense path
    x3 = jax.random.normal(kx3, (N, 3, 7, 7), dtype=jnp.float32)
    z3 = jax.nn.sigmoid(jax.random.normal(kz3, (N, 3), dtype=jnp.float32))
    out3 = gate_forward(x3, z3)
    jax.block_until_ready(out3)
    ref3 = x3 * z3[:, :, None, None]
    assert jnp.allclose(out3, ref3, atol=1e-6), "4D (7x7) gate mismatch"

    # 2-D (linear) path
    x2 = jax.random.normal(kx2, (N, C), dtype=jnp.float32)
    out2 = gate_forward(x2, z)
    jax.block_until_ready(out2)
    ref2 = x2 * z
    assert jnp.allclose(out2, ref2, atol=1e-6), "2D gate mismatch"

    # Mixed-dtype path: bf16 activations, f32 gates -> f32 output (PyTorch promotion)
    xb = jax.random.normal(kxb, (N, C, H, W), dtype=jnp.bfloat16)
    outb = gate_forward(xb, z)
    jax.block_until_ready(outb)
    refb = xb.astype(jnp.float32) * z[:, :, None, None]
    assert outb.dtype == jnp.float32
    assert jnp.allclose(outb, refb, atol=1e-6), "bf16 promotion gate mismatch"

    print("KERNEL_OK")
</pallas_src>

<mosaic_0001>
module attributes {stable_mosaic.version = 11 : i64} {
  func.func @_mul_kernel(%arg0: i32, %arg1: i32, %arg2: memref<8x256xf32, #tpu.memory_space<vmem>>, %arg3: memref<8x1xf32, #tpu.memory_space<vmem>>, %arg4: memref<8x256xf32, #tpu.memory_space<vmem>>) attributes {dimension_semantics = [#tpu.dimension_semantics<parallel>, #tpu.dimension_semantics<parallel>], iteration_bounds = array<i64: 1, 1>, scalar_prefetch = 0 : i64, scratch_operands = 0 : i64, tpu.core_type = #tpu.core_type<tc>, window_params = [{transform_indices = @transform_0, window_bounds = array<i64: 8, 256>}, {transform_indices = @transform_1, window_bounds = array<i64: 8, 1>}, {transform_indices = @transform_2, window_bounds = array<i64: 8, 256>}]} {
    %c0 = arith.constant 0 : index
    %c0_0 = arith.constant 0 : index
    %0 = vector.load %arg2[%c0, %c0_0] : memref<8x256xf32, #tpu.memory_space<vmem>>, vector<8x256xf32>
    %c0_1 = arith.constant 0 : index
    %c0_2 = arith.constant 0 : index
    %1 = vector.load %arg3[%c0_1, %c0_2] : memref<8x1xf32, #tpu.memory_space<vmem>>, vector<8x1xf32>
    %2 = vector.broadcast %1 : vector<8x1xf32> to vector<8x256xf32>
    %3 = arith.mulf %0, %2 : vector<8x256xf32>
    %c0_3 = arith.constant 0 : index
    %c0_4 = arith.constant 0 : index
    %4 = vector.load %arg4[%c0_3, %c0_4] : memref<8x256xf32, #tpu.memory_space<vmem>>, vector<8x256xf32>
    tpu.vector_store %arg4[%c0_3, %c0_4], %3 {strides = array<i32>} : memref<8x256xf32, #tpu.memory_space<vmem>>, vector<8x256xf32>,
    return
  }
  func.func @transform_0(%arg0: i32, %arg1: i32) -> (i32, i32) {
    %c0_i32 = arith.constant 0 : i32
    return %arg0, %arg1 : i32, i32
  }
  func.func @transform_1(%arg0: i32, %arg1: i32) -> (i32, i32) {
    %c0_i32 = arith.constant 0 : i32
    %c0_i32_0 = arith.constant 0 : i32
    return %arg0, %c0_i32 : i32, i32
  }
  func.func @transform_2(%arg0: i32, %arg1: i32) -> (i32, i32) {
    %c0_i32 = arith.constant 0 : i32
    return %arg0, %arg1 : i32, i32
  }
}

</mosaic_0001>

<llo_original>
// kernel: tpu_custom_call.1
$region0: #{tpu_custom_call.1}
  #allocation0 [shape = 'u32[]', space=smem, size = 0x4, offset = 0x4, fixed_abs, tag = 'smem constant byte address 0x4 - core index']
  #allocation1 [shape = 'u32[72,128]{1,0:T(1,128)}', space=vmem, size = 0x9000, scoped, tag = 'internal scratch']
  %s0 = inlined_call_operand.hbm [shape: f32[8,256], index: 0, kind: input, shape index: {}]
  %s1 = inlined_call_operand.vmem [shape: f32[8,1], index: 1, kind: input, shape index: {}]
  %s2 = inlined_call_operand.hbm [shape: f32[8,256], index: 2, kind: output, shape index: {}]
  %s3 = sld [smem:[#allocation0]]
  $region22: #{tpu_custom_call.1} parent=0
    _
  %s5 = ssub.s32 1, %s3
  %s6 = scalar_select 0, %s5, %s3
  $region1: #{tpu_custom_call.1} parent=0
    #allocation2 [shape = 'u8[8192]{0}', space=vmem, size = 0x2000, scoped, tag = 'input window, operand 0, single buffered']
    #allocation3 [shape = 's32[1]{0}', space=sflag, size = 0x4, scoped, tag = 'scoped memory for tpu_custom_call.1']
    #allocation4 [shape = 's32[1]{0}', space=sflag, size = 0x4, scoped, tag = 'scoped memory for tpu_custom_call.1']
    #allocation5 [shape = 'u8[8192]{0}', space=vmem, size = 0x2000, scoped, tag = 'output window, operand 0, single buffered']
    %7 = vsyncpa [#allocation3], 0
    %8 = vsyncpa [#allocation4], 0
    // Predicated region
    $region2: #{tpu_custom_call.1} parent=1 // pred_check
      _
    $region3: #{tpu_custom_call.1} parent=1 // pred_check_branch
      %10 = sbr.rel (0) target = $region5
    $region4: #{tpu_custom_call.1} parent=1 // pred_region
      %12 = vsyncadd [#allocation3], 0
      %s14 = sshll.u32 %s0, 4
      %s15 = int_to_ptr.hbm [resolvable:$true] %s14
      %s16 = sshll.u32 [#allocation2], 4
      %s17 = int_to_ptr.vmem [resolvable:$true] %s16
      %19 = dma.hbm_to_vmem [thread:$0]  %s15, 256, %s17, [#allocation3]
    $region5: #{tpu_custom_call.1} parent=1 // pred_fallthru
      _
    // Predicated region
    $region6: #{tpu_custom_call.1} parent=1 // pred_check
      _
    $region7: #{tpu_custom_call.1} parent=1 // pred_check_branch
      %21 = sbr.rel (0) target = $region9
    $region8: #{tpu_custom_call.1} parent=1 // pred_region
      _
    $region9: #{tpu_custom_call.1} parent=1 // pred_fallthru
      _
    // Predicated region
    $region10: #{tpu_custom_call.1} parent=1 // pred_check
      _
    $region11: #{tpu_custom_call.1} parent=1 // pred_check_branch
      %23 = sbr.rel (0) target = $region13
    $region12: #{tpu_custom_call.1} parent=1 // pred_region
      %25 = dma.done [#allocation3], 256
    $region13: #{tpu_custom_call.1} parent=1 // pred_fallthru
      _
    %v26 = vld [vmem:[#allocation2] sm:$0xff]
    %v27 = vld [vmem:[#allocation2 + $0x8] sm:$0xff]
    %v28 = vld [vmem:[%s1] sm:$0xff]
    %30 = vset.pattern.permute.xlu0 0
    %31 = vperm.xlu0 %30, %v28
    %v32 = vpop.permute.xlu0 %31
    %v34 = vmul.f32 %v26, %v32
    %v35 = vmul.f32 %v27, %v32
    %36 = vst [vmem:[#allocation5] sm:$0xff] %v34
    %37 = vst [vmem:[#allocation5 + $0x8] sm:$0xff] %v35
    // Predicated region
    $region14: #{tpu_custom_call.1} parent=1 // pred_check
      _
    $region15: #{tpu_custom_call.1} parent=1 // pred_check_branch
      %39 = sbr.rel (0) target = $region17
    $region16: #{tpu_custom_call.1} parent=1 // pred_region
      %41 = vsyncadd [#allocation4], 0
      %s43 = sshll.u32 [#allocation5], 4
      %s44 = int_to_ptr.vmem [resolvable:$true] %s43
      %s45 = sshll.u32 %s2, 4
      %s46 = int_to_ptr.hbm [resolvable:$true] %s45
      %48 = dma.vmem_to_hbm [thread:$0]  %s44, 256, %s46, [#allocation4]
    $region17: #{tpu_custom_call.1} parent=1 // pred_fallthru
      _
    // Predicated region
    $region18: #{tpu_custom_call.1} parent=1 // pred_check
      _
    $region19: #{tpu_custom_call.1} parent=1 // pred_check_branch
      %50 = sbr.rel (0) target = $region21
    $region20: #{tpu_custom_call.1} parent=1 // pred_region
      %52 = dma.done [#allocation4], 256
    $region21: #{tpu_custom_call.1} parent=1 // pred_fallthru
      _
    %53 = vsyncpa [#allocation3], 1
    %54 = vsyncpa [#allocation4], 1

</llo_original>
